<compile_context>
chip_gen: v7x
topology: tpu7x:2x2x1
jax: 0.10.0
libtpu: 0.0.40
codegen_flags: <defaults>
</compile_context>

<pallas_src>
import jax
import jax.numpy as jnp
from jax import lax
from jax.experimental import pallas as pl
from jax.experimental.pallas import tpu as pltpu

_IDX_LANES = 128       # lane-dense index output width (unmasked vst)
_MAX_ROW_TILE = 512    # measured: ~85% of HBM roofline already at 512-row tiles
_MIN_GRID_STEPS = 8    # ensure pipeline overlap + >= 4 steps per v7x core


def _gumbel_kernel(x_ref, noise_ref, y_ref, idx_ref):
    eps = 1e-20
    x = x_ref[...].astype(jnp.float32)
    u = noise_ref[...].astype(jnp.float32)

    # Gumbel transform g = -log(-log(u + eps) + eps)
    g = -jnp.log(-jnp.log(u + eps) + eps)

    # softmax / temperature dropped: argmax-invariant for T > 0, and the soft
    # probabilities never leave the kernel (forward value == y_hard).
    z = x + g

    z_max = jnp.max(z, axis=-1, keepdims=True)
    is_max = z == z_max
    y_ref[...] = is_max.astype(y_ref.dtype)

    # argmax along the last dim, first index among ties (matches torch.max)
    n = z.shape[-1]
    col = lax.broadcasted_iota(jnp.int32, z.shape, dimension=1)
    idx = jnp.min(jnp.where(is_max, col, n), axis=-1, keepdims=True)
    # lane-dense (unmasked) store: broadcast the per-row index across 128 lanes
    idx_ref[...] = jnp.broadcast_to(idx, idx_ref.shape)


def _physical_vmem_bytes():
    """Per-core physical VMEM (trace-time query; conservative v7x fallback)."""
    try:
        return int(pltpu.get_tpu_info().vmem_capacity_bytes)
    except Exception:
        return 64 * 1024 * 1024  # v7x has the smallest physical VMEM


def _choose_tiling(B, N, x_dtype, noise_dtype, out_dtype):
    """Pick (row_tile, vmem_limit_bytes) for the pipelined kernel."""
    x_is = jnp.dtype(x_dtype).itemsize
    n_is = jnp.dtype(noise_dtype).itemsize
    o_is = jnp.dtype(out_dtype).itemsize
    # Sublane packing of the narrowest dtype dictates row alignment:
    # 8 rows for 32-bit, 16 for bf16/i16, 32 for i8.
    row_align = max(8, 32 // min(x_is, n_is, o_is))
    # Per-row VMEM footprint incl. BlockSpec double-buffering (2 bufs/stream).
    per_row = 2 * N * (x_is + n_is + o_is) + 2 * _IDX_LANES * 4

    phys = _physical_vmem_bytes()
    budget = min(phys // 4, 20 * 1024 * 1024)  # fits v5e/v6e/v7x comfortably

    tb = budget // max(per_row, 1)
    tb = min(tb, _MAX_ROW_TILE)
    if B > 2 * row_align:
        # Force a multi-step grid so DMA overlaps compute and both v7x
        # TensorCores get blocks under dimension_semantics=("parallel",).
        tb = min(tb, max(pl.cdiv(B, _MIN_GRID_STEPS), row_align))
    tb = max(tb, row_align)  # never below one sublane tile
    if tb >= B:
        tb = B               # single block spanning the full (small) batch dim
    else:
        tb = max((tb // row_align) * row_align, row_align)

    # TODO(synk): for huge N (>~256K f32) even an 8-row tile overflows the
    # budget; a column-tiled ("arbitrary" N axis) running max / first-argmax
    # fallback would be needed to stay on the HBM roofline.
    footprint = per_row * tb
    vmem_limit = min(max(2 * footprint, 32 * 1024 * 1024), phys * 3 // 4)
    return int(tb), int(vmem_limit)


def gumbel_sampler(x, noise, temperature=0.5, out_dtype=jnp.bfloat16):
    """x, noise: (B, N) float arrays (f32 or bf16).

    Returns (y_hard: (B, N) one-hot in `out_dtype` (values exactly 0/1),
             max_idx: (1, B) int32).
    `temperature` only scales the (unused) soft probabilities, so it has no
    effect on the returned forward values; kept for API compatibility.
    """
    if isinstance(temperature, (int, float)) and not temperature > 0:
        raise ValueError(
            "temperature must be > 0: softmax/temperature is elided in-kernel,"
            " which is only argmax-invariant for positive temperature.")
    B, N = x.shape
    TB, vmem_limit = _choose_tiling(B, N, x.dtype, noise.dtype, out_dtype)
    grid = (pl.cdiv(B, TB),)

    bytes_accessed = (
        B * N * jnp.dtype(x.dtype).itemsize          # x read
        + B * N * jnp.dtype(noise.dtype).itemsize    # noise read
        + B * N * jnp.dtype(out_dtype).itemsize      # y_hard write
        + B * _IDX_LANES * 4                         # idx write
    )
    cost = pl.CostEstimate(
        flops=5 * B * N,
        transcendentals=2 * B * N,
        bytes_accessed=bytes_accessed,
    )

    y_hard, idx = pl.pallas_call(
        _gumbel_kernel,
        grid=grid,
        out_shape=(
            jax.ShapeDtypeStruct((B, N), out_dtype),
            jax.ShapeDtypeStruct((B, _IDX_LANES), jnp.int32),
        ),
        in_specs=[
            pl.BlockSpec((TB, N), lambda i: (i, 0)),
            pl.BlockSpec((TB, N), lambda i: (i, 0)),
        ],
        out_specs=(
            pl.BlockSpec((TB, N), lambda i: (i, 0)),
            pl.BlockSpec((TB, _IDX_LANES), lambda i: (i, 0)),
        ),
        compiler_params=pltpu.CompilerParams(
            dimension_semantics=("parallel",),
            vmem_limit_bytes=vmem_limit,
        ),
        cost_estimate=cost,
    )(x, noise)

    # glue: match PyTorch's max_idx.view(1, -1)
    return y_hard, idx[:, 0].reshape(1, -1)


if __name__ == "__main__":
    key = jax.random.PRNGKey(0)
    k1, k2 = jax.random.split(key)
    B, N = 64, 128  # small, vreg-aligned; 64 rows -> 4 pipelined grid steps
    x = jax.random.normal(k1, (B, N), dtype=jnp.float32)       # logits
    noise = jax.random.uniform(k2, (B, N), dtype=jnp.float32)  # U(0,1) noise

    y_hard, max_idx = gumbel_sampler(x, noise, temperature=0.5)
    jax.block_until_ready((y_hard, max_idx))

    # sanity checks against a pure-JAX reference of the PyTorch forward
    eps = 1e-20
    g = -jnp.log(-jnp.log(noise + eps) + eps)
    p = jax.nn.softmax((x + g) / 0.5, axis=-1)
    ref_idx = jnp.argmax(p, axis=-1).astype(jnp.int32)

    assert y_hard.shape == (B, N) and y_hard.dtype == jnp.bfloat16
    assert max_idx.shape == (1, B) and max_idx.dtype == jnp.int32
    assert bool(jnp.all(max_idx[0] == ref_idx))
    assert bool(jnp.all(jnp.sum(y_hard.astype(jnp.float32), axis=-1) >= 1.0))
    assert bool(jnp.all(y_hard[jnp.arange(B), ref_idx] == 1.0))

    # TODO(synk): backward straight-through estimator ((y_hard - y).detach() + y)
    # is autograd-only; this kernel implements the forward value (== y_hard).
    print("KERNEL_OK")
</pallas_src>

<mosaic_0001>
module attributes {stable_mosaic.version = 11 : i64} {
  func.func @_gumbel_kernel(%arg0: i32, %arg1: memref<16x128xf32, #tpu.memory_space<vmem>>, %arg2: memref<16x128xf32, #tpu.memory_space<vmem>>, %arg3: memref<16x128xbf16, #tpu.memory_space<vmem>>, %arg4: memref<16x128xi32, #tpu.memory_space<vmem>>) attributes {dimension_semantics = [#tpu.dimension_semantics<parallel>], iteration_bounds = array<i64: 4>, scalar_prefetch = 0 : i64, scratch_operands = 0 : i64, tpu.core_type = #tpu.core_type<tc>, window_params = [{transform_indices = @transform_0, window_bounds = array<i64: 16, 128>}, {transform_indices = @transform_1, window_bounds = array<i64: 16, 128>}, {transform_indices = @transform_2, window_bounds = array<i64: 16, 128>}, {transform_indices = @transform_3, window_bounds = array<i64: 16, 128>}]} {
    %c0 = arith.constant 0 : index
    %c0_0 = arith.constant 0 : index
    %0 = vector.load %arg1[%c0, %c0_0] : memref<16x128xf32, #tpu.memory_space<vmem>>, vector<16x128xf32>
    %c0_1 = arith.constant 0 : index
    %c0_2 = arith.constant 0 : index
    %1 = vector.load %arg2[%c0_1, %c0_2] : memref<16x128xf32, #tpu.memory_space<vmem>>, vector<16x128xf32>
    %cst = arith.constant 9.99999968E-21 : f32
    %2 = vector.broadcast %cst : f32 to vector<16x128xf32>
    %3 = arith.addf %1, %2 : vector<16x128xf32>
    %4 = math.log %3 : vector<16x128xf32>
    %cst_3 = arith.constant 0.000000e+00 : f32
    %5 = vector.broadcast %cst_3 : f32 to vector<16x128xf32>
    %6 = arith.subf %5, %4 : vector<16x128xf32>
    %cst_4 = arith.constant 9.99999968E-21 : f32
    %7 = vector.broadcast %cst_4 : f32 to vector<16x128xf32>
    %8 = arith.addf %6, %7 : vector<16x128xf32>
    %9 = math.log %8 : vector<16x128xf32>
    %cst_5 = arith.constant 0.000000e+00 : f32
    %10 = vector.broadcast %cst_5 : f32 to vector<16x128xf32>
    %11 = arith.subf %10, %9 : vector<16x128xf32>
    %12 = arith.addf %0, %11 : vector<16x128xf32>
    %cst_6 = arith.constant dense<0xFF800000> : vector<16xf32>
    %13 = vector.multi_reduction <maximumf>, %12, %cst_6 [1] : vector<16x128xf32> to vector<16xf32>
    %14 = vector.shape_cast %13 : vector<16xf32> to vector<16x1xf32>
    %15 = vector.broadcast %14 : vector<16x1xf32> to vector<16x128xf32>
    %16 = arith.cmpf oeq, %12, %15 : vector<16x128xf32>
    %17 = arith.extui %16 : vector<16x128xi1> to vector<16x128xi32>
    %18 = arith.sitofp %17 : vector<16x128xi32> to vector<16x128xf32>
    %19 = arith.truncf %18 : vector<16x128xf32> to vector<16x128xbf16>
    %c0_7 = arith.constant 0 : index
    %c0_8 = arith.constant 0 : index
    %20 = vector.load %arg3[%c0_7, %c0_8] : memref<16x128xbf16, #tpu.memory_space<vmem>>, vector<16x128xbf16>
    tpu.vector_store %arg3[%c0_7, %c0_8], %19 {strides = array<i32>} : memref<16x128xbf16, #tpu.memory_space<vmem>>, vector<16x128xbf16>,
    %21 = tpu.iota {dimensions = array<i32: 1>} : vector<16x128xi32>
    %c128_i32 = arith.constant 128 : i32
    %22 = vector.broadcast %c128_i32 : i32 to vector<16x128xi32>
    %23 = arith.select %16, %21, %22 : vector<16x128xi1>, vector<16x128xi32>
    %cst_9 = arith.constant dense<2147483647> : vector<16xi32>
    %24 = vector.multi_reduction <minsi>, %23, %cst_9 [1] : vector<16x128xi32> to vector<16xi32>
    %25 = vector.shape_cast %24 : vector<16xi32> to vector<16x1xi32>
    %26 = vector.shape_cast %25 : vector<16x1xi32> to vector<16x1xi32>
    %27 = vector.broadcast %26 : vector<16x1xi32> to vector<16x128xi32>
    %c0_10 = arith.constant 0 : index
    %c0_11 = arith.constant 0 : index
    %28 = vector.load %arg4[%c0_10, %c0_11] : memref<16x128xi32, #tpu.memory_space<vmem>>, vector<16x128xi32>
    tpu.vector_store %arg4[%c0_10, %c0_11], %27 {strides = array<i32>} : memref<16x128xi32, #tpu.memory_space<vmem>>, vector<16x128xi32>,
    return
  }
  func.func @transform_0(%arg0: i32) -> (i32, i32) {
    %c0_i32 = arith.constant 0 : i32
    %c0_i32_0 = arith.constant 0 : i32
    return %arg0, %c0_i32 : i32, i32
  }
  func.func @transform_1(%arg0: i32) -> (i32, i32) {
    %c0_i32 = arith.constant 0 : i32
    %c0_i32_0 = arith.constant 0 : i32
    return %arg0, %c0_i32 : i32, i32
  }
  func.func @transform_2(%arg0: i32) -> (i32, i32) {
    %c0_i32 = arith.constant 0 : i32
    %c0_i32_0 = arith.constant 0 : i32
    return %arg0, %c0_i32 : i32, i32
  }
  func.func @transform_3(%arg0: i32) -> (i32, i32) {
    %c0_i32 = arith.constant 0 : i32
    %c0_i32_0 = arith.constant 0 : i32
    return %arg0, %c0_i32 : i32, i32
  }
}

</mosaic_0001>

<llo_original>
// kernel: tpu_custom_call.1
$region0: #{tpu_custom_call.1}
  #allocation0 [shape = 'u32[]', space=smem, size = 0x4, offset = 0x4, fixed_abs, tag = 'smem constant byte address 0x4 - core index']
  #allocation1 [shape = 'u32[144,128]{1,0:T(1,128)}', space=vmem, size = 0x12000, scoped, tag = 'internal scratch']
  %s0 = inlined_call_operand.hbm [shape: f32[64,128], index: 0, kind: input, shape index: {}]
  %s1 = inlined_call_operand.hbm [shape: f32[64,128], index: 1, kind: input, shape index: {}]
  %s2 = inlined_call_operand.hbm [shape: bf16[64,128], index: 2, kind: output, shape index: {0}]
  %s3 = inlined_call_operand.hbm [shape: s32[64,128], index: 3, kind: output, shape index: {1}]
  %4 = xla_tuple %s2, %s3
  %s5 = sld [smem:[#allocation0]]
  $region57: #{tpu_custom_call.1} parent=0
    _
  %s7 = ssub.s32 1, %s5
  %s8 = scalar_select 0, %s7, %s5
  $region1: #{tpu_custom_call.1} parent=0
    #allocation2 [shape = 'u8[16384]{0}', space=vmem, size = 0x4000, scoped, tag = 'input window, operand 0']
    #allocation3 [shape = 's32[2]{0}', space=sflag, size = 0x8, scoped, tag = 'scoped memory for tpu_custom_call.1']
    #allocation4 [shape = 's32[2]{0}', space=sflag, size = 0x8, scoped, tag = 'scoped memory for tpu_custom_call.1']
    #allocation5 [shape = 'u8[16384]{0}', space=vmem, size = 0x4000, scoped, tag = 'input window, operand 1']
    #allocation6 [shape = 's32[2]{0}', space=sflag, size = 0x8, scoped, tag = 'scoped memory for tpu_custom_call.1']
    #allocation7 [shape = 'u8[8192]{0}', space=vmem, size = 0x2000, scoped, tag = 'output window, operand 0']
    #allocation8 [shape = 'u8[16384]{0}', space=vmem, size = 0x4000, scoped, tag = 'output window, operand 1']
    #allocation9 [shape = 's32[2]{0}', space=sflag, size = 0x8, scoped, tag = 'scoped memory for tpu_custom_call.1']
    %9 = vsyncpa [#allocation3], 0
    %s10 = scalar_lea.sflag [#allocation3], 1
    %11 = vsyncpa %s10, 0
    %12 = vsyncpa [#allocation6], 0
    %s13 = scalar_lea.sflag [#allocation6], 1
    %14 = vsyncpa %s13, 0
    %15 = vsyncpa [#allocation4], 0
    %s16 = scalar_lea.sflag [#allocation4], 1
    %17 = vsyncpa %s16, 0
    %18 = vsyncpa [#allocation9], 0
    %s19 = scalar_lea.sflag [#allocation9], 1
    %20 = vsyncpa %s19, 0
    loop: start=0, step=1, limit=6
    $region2: #{tpu_custom_call.1} parent=1 // loop_pre_header
      _
    $region3: #{tpu_custom_call.1} parent=1 // loop_header
      %s22 = sphi 0, %s26
      %p23 = scmp.ge.s32.totalorder %s22, 6
      %s32 = sphi 0, %s34
      %s35 = sphi 0, %s32
      %s36 = sphi 0, %s35
      %s52 = sphi 0, %s36
      %s58 = sphi 0, %s60
      %s61 = sphi 0, %s58
      %s62 = sphi 0, %s61
      %s78 = sphi 0, %s62
      %s84 = sphi 0, %s86
      %s87 = sphi 0, %s84
      %s88 = sphi 0, %s87
      %s104 = sphi 0, %s88
      %s110 = sphi 0, %s112
      %s113 = sphi 0, %s110
      %s114 = sphi 0, %s113
      %s130 = sphi 0, %s114
    $region4: #{tpu_custom_call.1} parent=1 // loop_header_branch
      %25 = sbr.rel (%p23) target = $region8
    $region5: #{tpu_custom_call.1} parent=1 // loop_body
      %s27 = ssub.s32 %s22, 1
      %s28 = ssub.s32 %s22, 2
      %s29 = sadd.s32 %s22, 1
      %s30 = ssub.s32 %s22, %s29
      %p31 = scmp.eq.s32.totalorder %s30, 0
      %s33 = sadd.s32 %s32, 1
      %s34 = scalar_select %p31, %s32, %s33
      %p37 = pneg %p31
      %p38 = scmp.eq.s32.totalorder %s22, 3
      %p39 = por %p37, %p38
      %p40 = scmp.ne.s32.totalorder %s32, %s35
      %p41 = scmp.eq.s32.totalorder %s22, 0
      %p42 = por %p40, %p41
      %p43 = scmp.ne.s32.totalorder %s32, %s35
      %p44 = scmp.eq.s32.totalorder %s27, 3
      %p45 = por %p43, %p44
      %p46 = scmp.ne.s32.totalorder %s35, %s36
      %p47 = scmp.eq.s32.totalorder %s27, 0
      %p48 = por %p46, %p47
      %p49 = scmp.ne.s32.totalorder %s35, %s36
      %p50 = scmp.eq.s32.totalorder %s28, 3
      %p51 = por %p49, %p50
      %p53 = scmp.ne.s32.totalorder %s36, %s52
      %p54 = scmp.eq.s32.totalorder %s28, 0
      %p55 = por %p53, %p54
      %s56 = ssub.s32 %s22, %s29
      %p57 = scmp.eq.s32.totalorder %s56, 0
      %s59 = sadd.s32 %s58, 1
      %s60 = scalar_select %p57, %s58, %s59
      %p63 = pneg %p57
      %p64 = scmp.eq.s32.totalorder %s22, 3
      %p65 = por %p63, %p64
      %p66 = scmp.ne.s32.totalorder %s58, %s61
      %p67 = scmp.eq.s32.totalorder %s22, 0
      %p68 = por %p66, %p67
      %p69 = scmp.ne.s32.totalorder %s58, %s61
      %p70 = scmp.eq.s32.totalorder %s27, 3
      %p71 = por %p69, %p70
      %p72 = scmp.ne.s32.totalorder %s61, %s62
      %p73 = scmp.eq.s32.totalorder %s27, 0
      %p74 = por %p72, %p73
      %p75 = scmp.ne.s32.totalorder %s61, %s62
      %p76 = scmp.eq.s32.totalorder %s28, 3
      %p77 = por %p75, %p76
      %p79 = scmp.ne.s32.totalorder %s62, %s78
      %p80 = scmp.eq.s32.totalorder %s28, 0
      %p81 = por %p79, %p80
      %s82 = ssub.s32 %s22, %s29
      %p83 = scmp.eq.s32.totalorder %s82, 0
      %s85 = sadd.s32 %s84, 1
      %s86 = scalar_select %p83, %s84, %s85
      %p89 = pneg %p83
      %p90 = scmp.eq.s32.totalorder %s22, 3
      %p91 = por %p89, %p90
      %p92 = scmp.ne.s32.totalorder %s84, %s87
      %p93 = scmp.eq.s32.totalorder %s22, 0
      %p94 = por %p92, %p93
      %p95 = scmp.ne.s32.totalorder %s84, %s87
      %p96 = scmp.eq.s32.totalorder %s27, 3
      %p97 = por %p95, %p96
      %p98 = scmp.ne.s32.totalorder %s87, %s88
      %p99 = scmp.eq.s32.totalorder %s27, 0
      %p100 = por %p98, %p99
      %p101 = scmp.ne.s32.totalorder %s87, %s88
      %p102 = scmp.eq.s32.totalorder %s28, 3
      %p103 = por %p101, %p102
      %p105 = scmp.ne.s32.totalorder %s88, %s104
      %p106 = scmp.eq.s32.totalorder %s28, 0
      %p107 = por %p105, %p106
      %s108 = ssub.s32 %s22, %s29
      %p109 = scmp.eq.s32.totalorder %s108, 0
      %s111 = sadd.s32 %s110, 1
      %s112 = scalar_select %p109, %s110, %s111
      %p115 = pneg %p109
      %p116 = scmp.eq.s32.totalorder %s22, 3
      %p117 = por %p115, %p116
      %p118 = scmp.ne.s32.totalorder %s110, %s113
      %p119 = scmp.eq.s32.totalorder %s22, 0
      %p120 = por %p118, %p119
      %p121 = scmp.ne.s32.totalorder %s110, %s113
      %p122 = scmp.eq.s32.totalorder %s27, 3
      %p123 = por %p121, %p122
      %p124 = scmp.ne.s32.totalorder %s113, %s114
      %p125 = scmp.eq.s32.totalorder %s27, 0
      %p126 = por %p124, %p125
      %p127 = scmp.ne.s32.totalorder %s113, %s114
      %p128 = scmp.eq.s32.totalorder %s28, 3
      %p129 = por %p127, %p128
      %p131 = scmp.ne.s32.totalorder %s114, %s130
      %p132 = scmp.eq.s32.totalorder %s28, 0
      %p133 = por %p131, %p132
      %p134 = scmp.le.s32.totalorder 1, %s22
      %p135 = scmp.lt.s32.totalorder %s22, 5
      %p136 = pnand %p134, %p135
      %p137 = pneg %p136
      // Predicated region
      $region9: #{tpu_custom_call.1} parent=5 // pred_check
        _
      $region10: #{tpu_custom_call.1} parent=5 // pred_check_branch
        %139 = sbr.rel (%p136) target = $region12
      $region11: #{tpu_custom_call.1} parent=5 // pred_region
        %s140 = ssub.s32 %s22, 1
      $region12: #{tpu_custom_call.1} parent=5 // pred_fallthru
        _
      %p141 = scmp.lt.s32.totalorder %s22, 4
      // Predicated region
      $region13: #{tpu_custom_call.1} parent=5 // pred_check
        %p142 = pneg %p141
      $region14: #{tpu_custom_call.1} parent=5 // pred_check_branch
        %144 = sbr.rel (%p142) target = $region16
      $region15: #{tpu_custom_call.1} parent=5 // pred_region
        // Predicated region
        $region17: #{tpu_custom_call.1} parent=15 // pred_check
          %p145 = pneg %p42
        $region18: #{tpu_custom_call.1} parent=15 // pred_check_branch
          %147 = sbr.rel (%p145) target = $region20
        $region19: #{tpu_custom_call.1} parent=15 // pred_region
          %s148 = sand.u32 %s32, 1
          %s149 = scalar_lea.sflag [#allocation3], %s148
          %s150 = sand.u32 %s32, 1
          %s151 = smul.addr %s150, 16
          %s152 = scalar_lea.vmem [#allocation2], %s151
          %s153 = smul.u32 2, %s22
          %s155 = ssub.s32 256, 256
          %156 = vsyncadd %s149, %s155
          %s157 = smul.addr %s153, 128
          %s158 = scalar_lea.hbm %s0, %s157
          %s159 = sshll.u32 %s152, 4
          %s160 = int_to_ptr.vmem [resolvable:$true] %s159
          %165 = dma.hbm_to_vmem [thread:$0]  %s158, 256, %s160, %s149, 128, 128, 8
        $region20: #{tpu_custom_call.1} parent=15 // pred_fallthru
          _
        // Predicated region
        $region21: #{tpu_custom_call.1} parent=15 // pred_check
          %p166 = pneg %p68
        $region22: #{tpu_custom_call.1} parent=15 // pred_check_branch
          %168 = sbr.rel (%p166) target = $region24
        $region23: #{tpu_custom_call.1} parent=15 // pred_region
          %s169 = sand.u32 %s58, 1
          %s170 = scalar_lea.sflag [#allocation6], %s169
          %s171 = sand.u32 %s58, 1
          %s172 = smul.addr %s171, 16
          %s173 = scalar_lea.vmem [#allocation5], %s172
          %s174 = smul.u32 2, %s22
          %s176 = ssub.s32 256, 256
          %177 = vsyncadd %s170, %s176
          %s178 = smul.addr %s174, 128
          %s179 = scalar_lea.hbm %s1, %s178
          %s180 = sshll.u32 %s173, 4
          %s181 = int_to_ptr.vmem [resolvable:$true] %s180
          %186 = dma.hbm_to_vmem [thread:$0]  %s179, 256, %s181, %s170, 128, 128, 8
        $region24: #{tpu_custom_call.1} parent=15 // pred_fallthru
          _
      $region16: #{tpu_custom_call.1} parent=5 // pred_fallthru
        _
      %p187 = scmp.le.s32.totalorder 1, %s22
      %p188 = scmp.lt.s32.totalorder %s22, 5
      %p189 = pnand %p187, %p188
      %p190 = pneg %p189
      // Predicated region
      $region25: #{tpu_custom_call.1} parent=5 // pred_check
        _
      $region26: #{tpu_custom_call.1} parent=5 // pred_check_branch
        %192 = sbr.rel (%p189) target = $region28
      $region27: #{tpu_custom_call.1} parent=5 // pred_region
        %s193 = ssub.s32 %s22, 1
        %s194 = sand.u32 %s35, 1
        %s195 = scalar_lea.sflag [#allocation3], %s194
        %s196 = sand.u32 %s35, 1
        %s197 = smul.addr %s196, 16
        %s198 = scalar_lea.vmem [#allocation2], %s197
        // Predicated region
        $region29: #{tpu_custom_call.1} parent=27 // pred_check
          %p199 = pneg %p48
        $region30: #{tpu_custom_call.1} parent=27 // pred_check_branch
          %201 = sbr.rel (%p199) target = $region32
        $region31: #{tpu_custom_call.1} parent=27 // pred_region
          %202 = dma.done %s195, 256
        $region32: #{tpu_custom_call.1} parent=27 // pred_fallthru
          _
        %s203 = sand.u32 %s61, 1
        %s204 = scalar_lea.sflag [#allocation6], %s203
        %s205 = sand.u32 %s61, 1
        %s206 = smul.addr %s205, 16
        %s207 = scalar_lea.vmem [#allocation5], %s206
        // Predicated region
        $region33: #{tpu_custom_call.1} parent=27 // pred_check
          %p208 = pneg %p74
        $region34: #{tpu_custom_call.1} parent=27 // pred_check_branch
          %210 = sbr.rel (%p208) target = $region36
        $region35: #{tpu_custom_call.1} parent=27 // pred_region
          %211 = dma.done %s204, 256
        $region36: #{tpu_custom_call.1} parent=27 // pred_fallthru
          _
        %s212 = sand.u32 %s35, 1
        %s213 = scalar_lea.sflag [#allocation3], %s212
        %s214 = sand.u32 %s35, 1
        %s215 = smul.addr %s214, 16
        %s216 = scalar_lea.vmem [#allocation2], %s215
        %p217 = pneg %p48
        %p218 = pneg %p45
        %s219 = sand.u32 %s61, 1
        %s220 = scalar_lea.sflag [#allocation6], %s219
        %s221 = sand.u32 %s61, 1
        %s222 = smul.addr %s221, 16
        %s223 = scalar_lea.vmem [#allocation5], %s222
        %p224 = pneg %p74
        %p225 = pneg %p71
        %p226 = pneg %p100
        %p227 = pneg %p97
        %s228 = sand.u32 %s87, 1
        %s229 = scalar_lea.sflag [#allocation4], %s228
        %s230 = sand.u32 %s87, 1
        %s231 = smul.addr %s230, 8
        %s232 = scalar_lea.vmem [#allocation7], %s231
        %p233 = pneg %p126
        %p234 = pneg %p123
        %s235 = sand.u32 %s113, 1
        %s236 = scalar_lea.sflag [#allocation9], %s235
        %s237 = sand.u32 %s113, 1
        %s238 = smul.addr %s237, 16
        %s239 = scalar_lea.vmem [#allocation8], %s238
        %s240 = smul.u32 2, %s27
        %s241 = smul.u32 2, %s27
        %s242 = smul.u32 2, %s27
        %s243 = smul.u32 2, %s27
        %v244 = vld [vmem:[%s198] sm:$0xff]
        %v245 = vld [vmem:[%s198 + $0x8] sm:$0xff]
        %v246 = vld [vmem:[%s207] sm:$0xff]
        %v247 = vld [vmem:[%s207 + $0x8] sm:$0xff]
        %v248 = vadd.f32 %v246, 1e-20
        %v249 = vadd.f32 %v247, 1e-20
        %v250 = vlog2.pop %v248
        %v251 = vmul.f32 %v250, 0.6931472
        %v252 = vlog2.pop %v249
        %v253 = vmul.f32 %v252, 0.6931472
        %v254 = vsub.f32 0.0, %v251
        %v255 = vsub.f32 0.0, %v253
        %v256 = vadd.f32 %v254, 1e-20
        %v257 = vadd.f32 %v255, 1e-20
        %v258 = vlog2.pop %v256
        %v259 = vmul.f32 %v258, 0.6931472
        %v260 = vlog2.pop %v257
        %v261 = vmul.f32 %v260, 0.6931472
        %v262 = vsub.f32 0.0, %v259
        %v263 = vsub.f32 0.0, %v261
        %v264 = vadd.f32 %v244, %v262
        %v265 = vadd.f32 %v245, %v263
        %266 = vmax.xlane.f32.xlu0 %v264
        %v267 = vpop.xlane.xlu0 %266
        %268 = vmax.xlane.f32.xlu0 %v265
        %v269 = vpop.xlane.xlu0 %268
        %vm270 = vcmp.eq.f32.partialorder %v264, %v267
        %vm271 = vcmp.eq.f32.partialorder %v265, %v269
        %v272 = vsel %vm270, 1, 0
        %v273 = vsel %vm271, 1, 0
        %v274 = vcvt.s32.f32 %v272
        %v275 = vcvt.s32.f32 %v273
        %v276 = vpack.c.bf16 %v275, %v274
        %v278 = vunpack.c.l.b16 %v276
        %v279 = vunpack.c.h.b16 %v276
        %v280 = vpack.c.b16 %v278, %v278
        %v281 = vpack.c.b16 %v279, %v279
        %284 = vst [vmem:[%s232] sm:$0xf] %v280
        %285 = vst [vmem:[%s232 + $0x4] sm:$0xf] %v281
        %v286 = vlaneseq
        %v287 = vand.u32 %v286, 127
        %v288 = vsel %vm270, %v287, 128
        %v289 = vsel %vm271, %v287, 128
        %v290 = vand.u32 %v288, 65535
        %v291 = vshra.s32 %v288, 16
        %v292 = vcvt.s32.f32 %v290
        %v293 = vcvt.s32.f32 %v291
        %294 = vmin.xlane.f32.xlu0 %v293
        %v295 = vpop.xlane.xlu0 %294
        %vm296 = vcmp.eq.f32.partialorder %v293, %v295
        %v297 = vsel %vm296, %v292, inf
        %298 = vmin.xlane.f32.xlu0 %v297
        %v299 = vpop.xlane.xlu0 %298
        %v300 = vcvt.f32.s32 %v299
        %v301 = vcvt.f32.s32 %v295
        %v302 = vshll.u32 %v301, 16
        %v303 = vadd.s32 %v302, %v300
        %v304 = vand.u32 %v289, 65535
        %v305 = vshra.s32 %v289, 16
        %v306 = vcvt.s32.f32 %v304
        %v307 = vcvt.s32.f32 %v305
        %308 = vmin.xlane.f32.xlu0 %v307
        %v309 = vpop.xlane.xlu0 %308
        %vm310 = vcmp.eq.f32.partialorder %v307, %v309
        %v311 = vsel %vm310, %v306, inf
        %312 = vmin.xlane.f32.xlu0 %v311
        %v313 = vpop.xlane.xlu0 %312
        %v314 = vcvt.f32.s32 %v313
        %v315 = vcvt.f32.s32 %v309
        %v316 = vshll.u32 %v315, 16
        %v317 = vadd.s32 %v316, %v314
        %318 = vst [vmem:[%s239] sm:$0xff] %v303
        %319 = vst [vmem:[%s239 + $0x8] sm:$0xff] %v317
        %s320 = sand.u32 %s87, 1
        %s321 = scalar_lea.sflag [#allocation4], %s320
        %s322 = sand.u32 %s87, 1
        %s323 = smul.addr %s322, 8
        %s324 = scalar_lea.vmem [#allocation7], %s323
        %s325 = sand.u32 %s113, 1
        %s326 = scalar_lea.sflag [#allocation9], %s325
        %s327 = sand.u32 %s113, 1
        %s328 = smul.addr %s327, 16
        %s329 = scalar_lea.vmem [#allocation8], %s328
        // Predicated region
        $region37: #{tpu_custom_call.1} parent=27 // pred_check
          %p330 = pneg %p97
        $region38: #{tpu_custom_call.1} parent=27 // pred_check_branch
          %332 = sbr.rel (%p330) target = $region40
        $region39: #{tpu_custom_call.1} parent=27 // pred_region
          %s333 = smul.u32 2, %s27
          %s335 = ssub.s32 128, 128
          %336 = vsyncadd %s321, %s335
          %s337 = smul.addr %s333, 64
          %s338 = scalar_lea.hbm %s2, %s337
          %s339 = sshll.u32 %s324, 4
          %s340 = int_to_ptr.vmem [resolvable:$true] %s339
          %345 = dma.vmem_to_hbm [thread:$0]  %s340, 128, %s338, %s321, 64, 64, 4
        $region40: #{tpu_custom_call.1} parent=27 // pred_fallthru
          _
        // Predicated region
        $region41: #{tpu_custom_call.1} parent=27 // pred_check
          %p346 = pneg %p123
        $region42: #{tpu_custom_call.1} parent=27 // pred_check_branch
          %348 = sbr.rel (%p346) target = $region44
        $region43: #{tpu_custom_call.1} parent=27 // pred_region
          %s349 = smul.u32 2, %s27
          %s351 = ssub.s32 256, 256
          %352 = vsyncadd %s326, %s351
          %s353 = smul.addr %s349, 128
          %s354 = scalar_lea.hbm %s3, %s353
          %s355 = sshll.u32 %s329, 4
          %s356 = int_to_ptr.vmem [resolvable:$true] %s355
          %361 = dma.vmem_to_hbm [thread:$0]  %s356, 256, %s354, %s326, 128, 128, 8
        $region44: #{tpu_custom_call.1} parent=27 // pred_fallthru
          _
      $region28: #{tpu_custom_call.1} parent=5 // pred_fallthru
        _
      %p362 = scmp.le.s32.totalorder 2, %s22
      // Predicated region
      $region45: #{tpu_custom_call.1} parent=5 // pred_check
        %p363 = pneg %p362
      $region46: #{tpu_custom_call.1} parent=5 // pred_check_branch
        %365 = sbr.rel (%p363) target = $region48
      $region47: #{tpu_custom_call.1} parent=5 // pred_region
        %s366 = ssub.s32 %s22, 2
        // Predicated region
        $region49: #{tpu_custom_call.1} parent=47 // pred_check
          %p367 = pneg %p103
        $region50: #{tpu_custom_call.1} parent=47 // pred_check_branch
          %369 = sbr.rel (%p367) target = $region52
        $region51: #{tpu_custom_call.1} parent=47 // pred_region
          %s370 = sand.u32 %s88, 1
          %s371 = scalar_lea.sflag [#allocation4], %s370
          %s372 = sand.u32 %s88, 1
          %s373 = smul.addr %s372, 8
          %s374 = scalar_lea.vmem [#allocation7], %s373
          %375 = dma.done %s371, 128
        $region52: #{tpu_custom_call.1} parent=47 // pred_fallthru
          _
        // Predicated region
        $region53: #{tpu_custom_call.1} parent=47 // pred_check
          %p376 = pneg %p129
        $region54: #{tpu_custom_call.1} parent=47 // pred_check_branch
          %378 = sbr.rel (%p376) target = $region56
        $region55: #{tpu_custom_call.1} parent=47 // pred_region
          %s379 = sand.u32 %s114, 1
          %s380 = scalar_lea.sflag [#allocation9], %s379
          %s381 = sand.u32 %s114, 1
          %s382 = smul.addr %s381, 16
          %s383 = scalar_lea.vmem [#allocation8], %s382
          %384 = dma.done %s380, 256
        $region56: #{tpu_custom_call.1} parent=47 // pred_fallthru
          _
      $region48: #{tpu_custom_call.1} parent=5 // pred_fallthru
        _
    $region6: #{tpu_custom_call.1} parent=1 // loop_footer
      %s26 = sadd.s32 1, %s22
    $region7: #{tpu_custom_call.1} parent=1 // loop_footer_branch
      %21 = sbr.rel target = $region3
    $region8: #{tpu_custom_call.1} parent=1 // loop_exit
      _
    %385 = vsyncpa [#allocation3], 1
    %s386 = scalar_lea.sflag [#allocation3], 1
    %387 = vsyncpa %s386, 1
    %388 = vsyncpa [#allocation6], 1
    %s389 = scalar_lea.sflag [#allocation6], 1
    %390 = vsyncpa %s389, 1
    %391 = vsyncpa [#allocation4], 1
    %s392 = scalar_lea.sflag [#allocation4], 1
    %393 = vsyncpa %s392, 1
    %394 = vsyncpa [#allocation9], 1
    %s395 = scalar_lea.sflag [#allocation9], 1
    %396 = vsyncpa %s395, 1

</llo_original>
